<compile_context>
chip_gen: v7x
topology: tpu7x:2x2x1
jax: 0.10.0
libtpu: 0.0.40
codegen_flags: <defaults>
</compile_context>

<pallas_src>
import functools
import math

import jax
import jax.numpy as jnp
from jax.experimental import pallas as pl
from jax.experimental.pallas import tpu as pltpu


def _round_up(x, m):
    return ((x + m - 1) // m) * m


def _pick_tile(n, max_tile=512):
    # Lane/sublane friendly tile: multiple of 128, capped so double-buffered A tiles
    # stay tiny relative to VMEM (re-derive the cap if targeting v7x's 64 MiB VMEM
    # with much larger max_tile).
    return min(max_tile, _round_up(max(n, 1), 128))


# --------------------------------------------------------------------------------------
# Stage 1: LorentzLinear  (h = X @ W^T, then Lorentz time/space projection)
# --------------------------------------------------------------------------------------
def _lorentz_linear_kernel(x_ref, w_ref, xl_ref, *, scale_exp):
    h = jnp.dot(x_ref[...], w_ref[...], preferred_element_type=jnp.float32)  # (tN, D)

    x0 = h[:, 0:1]                                              # "time" column (static slice)
    total_sq = jnp.sum(h * h, axis=-1, keepdims=True)           # one XLU reduce
    space_sq = jnp.maximum(total_sq - x0 * x0, 1e-8)

    time = jax.nn.sigmoid(x0) * scale_exp + 1.1
    scl = (time * time - 1.0) * pl.reciprocal(space_sq, approx=False)   # EUP reciprocal
    scaled = h * jnp.sqrt(scl)

    col = jax.lax.broadcasted_iota(jnp.int32, h.shape, 1)
    xl_ref[...] = jnp.where(col == 0, time, scaled)


# --------------------------------------------------------------------------------------
# Stage 2: vertex -> hyperedge aggregation  Xe = A @ Xl, then Lorentz renormalization
# grid = (E tiles, N tiles); N is the reduction axis (last, "arbitrary")
# --------------------------------------------------------------------------------------
def _edge_agg_kernel(a_ref, xl_ref, xe_ref, acc_ref, *, sqrt_c):
    k = pl.program_id(1)

    @pl.when(k == 0)
    def _():
        acc_ref[...] = jnp.zeros_like(acc_ref)

    acc_ref[...] += jnp.dot(a_ref[...].astype(jnp.float32), xl_ref[...],
                            preferred_element_type=jnp.float32)

    @pl.when(k == pl.num_programs(1) - 1)
    def _():
        xe = acc_ref[...]
        e0 = xe[:, 0:1]
        total_sq = jnp.sum(xe * xe, axis=-1, keepdims=True)
        neg_inner = 2.0 * e0 * e0 - total_sq                 # = -<Xe, Xe>_Lorentz
        inv_denom = jax.lax.rsqrt(jnp.maximum(jnp.abs(neg_inner), 1e-8))   # EUP rsqrt
        xe_ref[...] = xe * (inv_denom * sqrt_c)              # /(denom*sqrt(1/c)) == *rsqrt*sqrt(c)


# --------------------------------------------------------------------------------------
# Stage 3: hyperedge -> vertex aggregation  Xv = A^T @ Xe  (leading-axis contraction,
# no materialized transpose), then out = eps * Xv + Xl
# grid = (N tiles, E tiles); E is the reduction axis (last, "arbitrary")
# --------------------------------------------------------------------------------------
def _vertex_agg_kernel(a_ref, xe_ref, xl_ref, out_ref, acc_ref, *, eps):
    k = pl.program_id(1)

    @pl.when(k == 0)
    def _():
        acc_ref[...] = jnp.zeros_like(acc_ref)

    # a_ref block is (tE, tN): contract the edge (leading) axis directly on the MXU.
    acc_ref[...] += jax.lax.dot_general(
        a_ref[...].astype(jnp.float32), xe_ref[...],
        dimension_numbers=(((0,), (0,)), ((), ())),
        preferred_element_type=jnp.float32)

    @pl.when(k == pl.num_programs(1) - 1)
    def _():
        out_ref[...] = eps * acc_ref[...] + xl_ref[...]


# --------------------------------------------------------------------------------------
# Wrapper
# --------------------------------------------------------------------------------------
def h2conv_forward(X, vertex, edges, num_edges, weight, scale_param, eps, c):
    """X: (N, Cin) f32; vertex/edges: (nnz,) int32; weight: (D, Cin) torch-style."""
    N, Cin = X.shape
    D = weight.shape[0]
    E = int(num_edges)

    TN = _pick_tile(N)
    TE = _pick_tile(E)
    Np = _round_up(N, TN)
    Ep = _round_up(E, TE)

    x_pad = jnp.zeros((Np, Cin), jnp.float32).at[:N].set(jnp.asarray(X, jnp.float32))
    w_t = jnp.asarray(weight, jnp.float32).T                     # (Cin, D)

    # Dense incidence A[e, n] = multiplicity of (edge e, vertex n); counts are small
    # integers -> exact in bf16 (must stay < 256). Padded rows/cols are zero so the
    # padded region contributes nothing.
    inc = (jnp.zeros((Ep, Np), jnp.float32)
           .at[jnp.asarray(edges, jnp.int32), jnp.asarray(vertex, jnp.int32)]
           .add(1.0)
           .astype(jnp.bfloat16))

    scale_exp = math.exp(float(scale_param))     # LorentzLinear stores log(scale)
    sqrt_c = math.sqrt(float(c))
    eps_f = float(eps)
    # NOTE: scale/eps are folded at trace time here; for traced (learnable) params pass
    # them through an SMEM scalar input instead.

    # ---- Stage 1: LorentzLinear over vertex tiles --------------------------------
    xl = pl.pallas_call(
        functools.partial(_lorentz_linear_kernel, scale_exp=scale_exp),
        out_shape=jax.ShapeDtypeStruct((Np, D), jnp.float32),
        grid_spec=pltpu.PrefetchScalarGridSpec(
            num_scalar_prefetch=0,
            grid=(Np // TN,),
            in_specs=[
                pl.BlockSpec((TN, Cin), lambda i: (i, 0)),
                pl.BlockSpec((Cin, D), lambda i: (0, 0)),
            ],
            out_specs=pl.BlockSpec((TN, D), lambda i: (i, 0)),
        ),
        compiler_params=pltpu.CompilerParams(dimension_semantics=("parallel",)),
        cost_estimate=pl.CostEstimate(
            flops=2 * Np * Cin * D,
            transcendentals=3 * Np,
            bytes_accessed=4 * (Np * Cin + Cin * D + Np * D)),
    )(x_pad, w_t)

    # ---- Stage 2: Xe = A @ Xl, Lorentz renorm -------------------------------------
    xe = pl.pallas_call(
        functools.partial(_edge_agg_kernel, sqrt_c=sqrt_c),
        out_shape=jax.ShapeDtypeStruct((Ep, D), jnp.float32),
        grid_spec=pltpu.PrefetchScalarGridSpec(
            num_scalar_prefetch=0,
            grid=(Ep // TE, Np // TN),
            in_specs=[
                pl.BlockSpec((TE, TN), lambda i, k: (i, k)),    # A (bf16)
                pl.BlockSpec((TN, D), lambda i, k: (k, 0)),     # Xl
            ],
            out_specs=pl.BlockSpec((TE, D), lambda i, k: (i, 0)),
            scratch_shapes=[pltpu.VMEM((TE, D), jnp.float32)],
        ),
        compiler_params=pltpu.CompilerParams(
            dimension_semantics=("parallel", "arbitrary")),
        cost_estimate=pl.CostEstimate(
            flops=2 * Ep * Np * D,
            transcendentals=Ep,
            bytes_accessed=2 * Ep * Np + 4 * (Np * D + Ep * D)),
    )(inc, xl)

    # ---- Stage 3: Xv = A^T @ Xe (leading-axis contraction), out = eps*Xv + Xl -----
    out_pad = pl.pallas_call(
        functools.partial(_vertex_agg_kernel, eps=eps_f),
        out_shape=jax.ShapeDtypeStruct((Np, D), jnp.float32),
        grid_spec=pltpu.PrefetchScalarGridSpec(
            num_scalar_prefetch=0,
            grid=(Np // TN, Ep // TE),
            in_specs=[
                pl.BlockSpec((TE, TN), lambda i, k: (k, i)),    # A (bf16), same buffer
                pl.BlockSpec((TE, D), lambda i, k: (k, 0)),     # Xe
                pl.BlockSpec((TN, D), lambda i, k: (i, 0)),     # Xl (residual, resident)
            ],
            out_specs=pl.BlockSpec((TN, D), lambda i, k: (i, 0)),
            scratch_shapes=[pltpu.VMEM((TN, D), jnp.float32)],
        ),
        compiler_params=pltpu.CompilerParams(
            dimension_semantics=("parallel", "arbitrary")),
        cost_estimate=pl.CostEstimate(
            flops=2 * Np * Ep * D,
            transcendentals=0,
            bytes_accessed=2 * Ep * Np + 4 * (Ep * D + 2 * Np * D)),
    )(inc, xe, xl)

    return out_pad[:N]


def h2conv_reference(X, vertex, edges, num_edges, weight, scale_param, eps, c):
    """Pure-JAX reference mirroring the PyTorch forward (for validation)."""
    h = X @ weight.T
    x0, xr = h[:, :1], h[:, 1:]
    time = jax.nn.sigmoid(x0) * jnp.exp(scale_param) + 1.1
    scl = (time * time - 1.0) / jnp.maximum(jnp.sum(xr * xr, -1, keepdims=True), 1e-8)
    Xl = jnp.concatenate([time, xr * jnp.sqrt(scl)], axis=-1)
    Xve = Xl[vertex]
    Xe = jnp.zeros((num_edges, Xl.shape[1]), jnp.float32).at[edges].add(Xve)
    inner = -Xe[:, :1] ** 2 + jnp.sum(Xe[:, 1:] ** 2, -1, keepdims=True)
    denom = jnp.sqrt(jnp.maximum(jnp.abs(-inner), 1e-8))
    Xe = Xe / (denom * math.sqrt(1.0 / c))
    Xev = Xe[edges]
    Xv = jnp.zeros_like(Xl).at[vertex].add(Xev)
    return eps * Xv + Xl


if __name__ == "__main__":
    # Small shapes consistent with the module.
    in_channels = 16
    out_channels = 4
    heads = 8
    D = heads * out_channels          # 32
    N = 16                            # nodes
    E = 8                             # hyperedges
    nnz = 48                          # incidence entries
    c = 1.0

    key = jax.random.PRNGKey(0)
    k_x, k_w, k_v, k_e = jax.random.split(key, 4)

    X = jax.random.normal(k_x, (N, in_channels), jnp.float32)
    vertex = jax.random.randint(k_v, (nnz,), 0, N, jnp.int32)
    edges = jax.random.randint(k_e, (nnz,), 0, E, jnp.int32)

    # Deterministic parameter init (synthetic; mirrors LorentzLinear reset_parameters
    # shape-wise: weight (heads*out_channels, in_channels), uniform(-stdv, stdv)).
    stdv = 1.0 / math.sqrt(D)
    weight = jax.random.uniform(k_w, (D, in_channels), jnp.float32, -stdv, stdv)
    scale_param = math.log(10.0)      # LorentzLinear scale init: log(scale=10)
    eps = 0.5                         # ManifoldParameter([0.5])

    out = h2conv_forward(X, vertex, edges, E, weight, scale_param, eps, c)
    out = jax.block_until_ready(out)

    ref = h2conv_reference(X, vertex, edges, E, weight,
                           jnp.float32(scale_param), jnp.float32(eps), c)
    assert out.shape == (N, D)
    assert jnp.allclose(out, ref, rtol=1e-4, atol=1e-4), "mismatch vs reference"

    print("KERNEL_OK")
</pallas_src>

<mosaic_0001>
module attributes {stable_mosaic.version = 11 : i64} {
  func.func @_lorentz_linear_kernel(%arg0: i32, %arg1: memref<128x16xf32, #tpu.memory_space<vmem>>, %arg2: memref<16x32xf32, #tpu.memory_space<vmem>>, %arg3: memref<128x32xf32, #tpu.memory_space<vmem>>) attributes {dimension_semantics = [#tpu.dimension_semantics<parallel>], iteration_bounds = array<i64: 1>, scalar_prefetch = 0 : i64, scratch_operands = 0 : i64, tpu.core_type = #tpu.core_type<tc>, window_params = [{transform_indices = @transform_0, window_bounds = array<i64: 128, 16>}, {pipeline_mode = #tpu.pipeline_mode<synchronous>, transform_indices = @transform_1, window_bounds = array<i64: 16, 32>}, {transform_indices = @transform_2, window_bounds = array<i64: 128, 32>}]} {
    %c0 = arith.constant 0 : index
    %c0_0 = arith.constant 0 : index
    %0 = vector.load %arg1[%c0, %c0_0] : memref<128x16xf32, #tpu.memory_space<vmem>>, vector<128x16xf32>
    %c0_1 = arith.constant 0 : index
    %c0_2 = arith.constant 0 : index
    %1 = vector.load %arg2[%c0_1, %c0_2] : memref<16x32xf32, #tpu.memory_space<vmem>>, vector<16x32xf32>
    %cst = arith.constant dense<0.000000e+00> : vector<128x32xf32>
    %2 = tpu.matmul %0, %1, %cst {dimension_numbers = #tpu.dot_dimension_numbers<[1], [0], [0], [1], [0, 0, 1, 1], [], []>} : vector<128x16xf32>, vector<16x32xf32>, vector<128x32xf32> -> vector<128x32xf32>
    %3 = vector.extract_strided_slice %2 {offsets = [0, 0], sizes = [128, 1], strides = [1, 1]} : vector<128x32xf32> to vector<128x1xf32>
    %4 = arith.mulf %2, %2 : vector<128x32xf32>
    %cst_3 = arith.constant dense<0.000000e+00> : vector<128xf32>
    %5 = vector.multi_reduction <add>, %4, %cst_3 [1] : vector<128x32xf32> to vector<128xf32>
    %6 = vector.shape_cast %5 : vector<128xf32> to vector<128x1xf32>
    %7 = arith.mulf %3, %3 : vector<128x1xf32>
    %8 = arith.subf %6, %7 : vector<128x1xf32>
    %cst_4 = arith.constant 9.99999993E-9 : f32
    %9 = vector.broadcast %cst_4 : f32 to vector<128x1xf32>
    %10 = arith.maximumf %8, %9 : vector<128x1xf32>
    %11 = arith.negf %3 : vector<128x1xf32>
    %12 = math.exp %11 : vector<128x1xf32>
    %cst_5 = arith.constant 1.000000e+00 : f32
    %13 = vector.broadcast %cst_5 : f32 to vector<128x1xf32>
    %14 = arith.addf %13, %12 : vector<128x1xf32>
    %15 = arith.divf %13, %14 : vector<128x1xf32>
    %cst_6 = arith.constant 1.000000e+01 : f32
    %16 = vector.broadcast %cst_6 : f32 to vector<128x1xf32>
    %17 = arith.mulf %15, %16 : vector<128x1xf32>
    %cst_7 = arith.constant 1.100000e+00 : f32
    %18 = vector.broadcast %cst_7 : f32 to vector<128x1xf32>
    %19 = arith.addf %17, %18 : vector<128x1xf32>
    %20 = arith.mulf %19, %19 : vector<128x1xf32>
    %cst_8 = arith.constant 1.000000e+00 : f32
    %21 = vector.broadcast %cst_8 : f32 to vector<128x1xf32>
    %22 = arith.subf %20, %21 : vector<128x1xf32>
    %23 = tpu.reciprocal %10 : vector<128x1xf32> -> vector<128x1xf32>
    %24 = arith.mulf %22, %23 : vector<128x1xf32>
    %25 = math.sqrt %24 : vector<128x1xf32>
    %26 = vector.broadcast %25 : vector<128x1xf32> to vector<128x32xf32>
    %27 = arith.mulf %2, %26 : vector<128x32xf32>
    %28 = tpu.iota {dimensions = array<i32: 1>} : vector<128x32xi32>
    %c0_i32 = arith.constant 0 : i32
    %29 = vector.broadcast %c0_i32 : i32 to vector<128x32xi32>
    %30 = arith.cmpi eq, %28, %29 : vector<128x32xi32>
    %31 = vector.shape_cast %19 : vector<128x1xf32> to vector<128x1xf32>
    %32 = vector.broadcast %31 : vector<128x1xf32> to vector<128x32xf32>
    %33 = arith.select %30, %32, %27 : vector<128x32xi1>, vector<128x32xf32>
    %c0_9 = arith.constant 0 : index
    %c0_10 = arith.constant 0 : index
    %34 = vector.load %arg3[%c0_9, %c0_10] : memref<128x32xf32, #tpu.memory_space<vmem>>, vector<128x32xf32>
    tpu.vector_store %arg3[%c0_9, %c0_10], %33 {strides = array<i32>} : memref<128x32xf32, #tpu.memory_space<vmem>>, vector<128x32xf32>,
    return
  }
  func.func @transform_0(%arg0: i32) -> (i32, i32) {
    %c0_i32 = arith.constant 0 : i32
    %c0_i32_0 = arith.constant 0 : i32
    return %arg0, %c0_i32 : i32, i32
  }
  func.func @transform_1(%arg0: i32) -> (i32, i32) {
    %c0_i32 = arith.constant 0 : i32
    %c0_i32_0 = arith.constant 0 : i32
    %c0_i32_1 = arith.constant 0 : i32
    return %c0_i32, %c0_i32_0 : i32, i32
  }
  func.func @transform_2(%arg0: i32) -> (i32, i32) {
    %c0_i32 = arith.constant 0 : i32
    %c0_i32_0 = arith.constant 0 : i32
    return %arg0, %c0_i32 : i32, i32
  }
}

</mosaic_0001>

<llo_original>
// kernel: tpu_custom_call.1
$region0: #{tpu_custom_call.1}
  #allocation0 [shape = 'u32[]', space=smem, size = 0x4, offset = 0x4, fixed_abs, tag = 'smem constant byte address 0x4 - core index']
  #allocation1 [shape = 'u32[144,128]{1,0:T(1,128)}', space=vmem, size = 0x12000, scoped, tag = 'internal scratch']
  %s0 = inlined_call_operand.vmem [shape: f32[128,16], index: 0, kind: input, shape index: {}]
  %s1 = inlined_call_operand.vmem [shape: f32[16,32], index: 1, kind: input, shape index: {}]
  %s2 = inlined_call_operand.vmem [shape: f32[128,32], index: 2, kind: output, shape index: {}]
  %s3 = sld [smem:[#allocation0]]
  $region18: #{tpu_custom_call.1} parent=0
    _
  %s5 = ssub.s32 1, %s3
  %s6 = scalar_select 0, %s5, %s3
  // Predicated region
  $region2: #{tpu_custom_call.1} parent=0 // pred_check
    _
  $region3: #{tpu_custom_call.1} parent=0 // pred_check_branch
    %8 = sbr.rel (0) target = $region5
  $region4: #{tpu_custom_call.1} parent=0 // pred_region
    _
  $region5: #{tpu_custom_call.1} parent=0 // pred_fallthru
    _
  // Predicated region
  $region6: #{tpu_custom_call.1} parent=0 // pred_check
    _
  $region7: #{tpu_custom_call.1} parent=0 // pred_check_branch
    %10 = sbr.rel (0) target = $region9
  $region8: #{tpu_custom_call.1} parent=0 // pred_region
    _
  $region9: #{tpu_custom_call.1} parent=0 // pred_fallthru
    _
  %v11 = vld [vmem:[%s0] sm:$0xff]
  %v12 = vld [vmem:[%s0 + $0x8] sm:$0xff]
  %v13 = vld [vmem:[%s0 + $0x10] sm:$0xff]
  %v14 = vld [vmem:[%s0 + $0x18] sm:$0xff]
  %v15 = vld [vmem:[%s0 + $0x20] sm:$0xff]
  %v16 = vld [vmem:[%s0 + $0x28] sm:$0xff]
  %v17 = vld [vmem:[%s0 + $0x30] sm:$0xff]
  %v18 = vld [vmem:[%s0 + $0x38] sm:$0xff]
  %v19 = vld [vmem:[%s0 + $0x40] sm:$0xff]
  %v20 = vld [vmem:[%s0 + $0x48] sm:$0xff]
  %v21 = vld [vmem:[%s0 + $0x50] sm:$0xff]
  %v22 = vld [vmem:[%s0 + $0x58] sm:$0xff]
  %v23 = vld [vmem:[%s0 + $0x60] sm:$0xff]
  %v24 = vld [vmem:[%s0 + $0x68] sm:$0xff]
  %v25 = vld [vmem:[%s0 + $0x70] sm:$0xff]
  %v26 = vld [vmem:[%s0 + $0x78] sm:$0xff]
  %v27 = vld [vmem:[%s1] sm:$0xff]
  %v28 = vld [vmem:[%s1 + $0x8] sm:$0xff]
  %vm29 = vcmask 130048
  %v31 = vsel %vm29, %v11, 0
  %v34 = vsel %vm29, %v12, 0
  %v37 = vsel %vm29, %v13, 0
  %v40 = vsel %vm29, %v14, 0
  %v43 = vsel %vm29, %v15, 0
  %v46 = vsel %vm29, %v16, 0
  %v49 = vsel %vm29, %v17, 0
  %v52 = vsel %vm29, %v18, 0
  %v55 = vsel %vm29, %v19, 0
  %v58 = vsel %vm29, %v20, 0
  %v61 = vsel %vm29, %v21, 0
  %v64 = vsel %vm29, %v22, 0
  %v67 = vsel %vm29, %v23, 0
  %v70 = vsel %vm29, %v24, 0
  %v73 = vsel %vm29, %v25, 0
  %v76 = vsel %vm29, %v26, 0
  %78 = vmatprep.subr.mxu0 0.0
  %79 = vmatpush1.msra.mxu0 %v27
  %80 = vmatprep.subr.mxu0 0.0
  %81 = vmatpush1.msra.mxu0 %v28
  %82 = vmatprep.subr.mxu0 0.0
  %83 = vmatpush1.msra.mxu0 0.0
  %84 = vmatprep.subr.mxu0 0.0
  %85 = vmatpush1.msra.mxu0 0.0
  %86 = vmatprep.subr.mxu0 0.0
  %87 = vmatpush1.msra.mxu0 0.0
  %88 = vmatprep.subr.mxu0 0.0
  %89 = vmatpush1.msra.mxu0 0.0
  %90 = vmatprep.subr.mxu0 0.0
  %91 = vmatpush1.msra.mxu0 0.0
  %92 = vmatprep.subr.mxu0 0.0
  %93 = vmatpush1.msra.mxu0 0.0
  %94 = vmatprep.subr.mxu0 0.0
  %95 = vmatpush1.msra.mxu0 0.0
  %96 = vmatprep.subr.mxu0 0.0
  %97 = vmatpush1.msra.mxu0 0.0
  %98 = vmatprep.subr.mxu0 0.0
  %99 = vmatpush1.msra.mxu0 0.0
  %100 = vmatprep.subr.mxu0 0.0
  %101 = vmatpush1.msra.mxu0 0.0
  %102 = vmatprep.subr.mxu0 0.0
  %103 = vmatpush1.msra.mxu0 0.0
  %104 = vmatprep.subr.mxu0 0.0
  %105 = vmatpush1.msra.mxu0 0.0
  %106 = vmatprep.subr.mxu0 0.0
  %107 = vmatpush1.msra.mxu0 0.0
  %108 = vmatprep.subr.mxu0 0.0
  %109 = vmatpush1.msra.mxu0 0.0
  %110 = vmatprep.subr.mxu0 0.0
  %111 = vmatpush1.msra.mxu0 0.0
  %112 = vmatprep.subr.mxu0 0.0
  %113 = vmatpush1.msra.mxu0 0.0
  %114 = vmatprep.subr.mxu0 0.0
  %115 = vmatpush1.msra.mxu0 0.0
  %116 = vmatprep.subr.mxu0 0.0
  %117 = vmatpush1.msra.mxu0 0.0
  %118 = vmatprep.subr.mxu0 0.0
  %119 = vmatpush1.msra.mxu0 0.0
  %120 = vmatprep.subr.mxu0 0.0
  %121 = vmatpush1.msra.mxu0 0.0
  %122 = vmatprep.subr.mxu0 0.0
  %123 = vmatpush1.msra.mxu0 0.0
  %124 = vmatprep.subr.mxu0 0.0
  %125 = vmatpush1.msra.mxu0 0.0
  %126 = vmatprep.subr.mxu0 0.0
  %127 = vmatpush1.msra.mxu0 0.0
  %128 = vmatprep.subr.mxu0 0.0
  %129 = vmatpush1.msra.mxu0 0.0
  %130 = vmatprep.subr.mxu0 0.0
  %131 = vmatpush1.msra.mxu0 0.0
  %132 = vmatprep.subr.mxu0 0.0
  %133 = vmatpush1.msra.mxu0 0.0
  %134 = vmatprep.subr.mxu0 0.0
  %135 = vmatpush1.msra.mxu0 0.0
  %136 = vmatprep.subr.mxu0 0.0
  %137 = vmatpush1.msra.mxu0 0.0
  %138 = vmatprep.subr.mxu0 0.0
  %139 = vmatpush1.msra.mxu0 0.0
  %140 = vmatprep.subr.mxu0 0.0
  %141 = vmatpush1.msra.mxu0 0.0
  %142 = vmatprep.mubr.f32.mxu0 0.0
  %143 = vmatmul.mubr.f32.gmra.mrb[0].mxu0 %v31
  %v144 = vpop.f32.mrb[0].mxu0
  %v145 = vadd.f32 0.0, %v144
  %v146 = vpop.f32.mrb[0].mxu0
  %147 = vmatprep.mubr.f32.mxu0 0.0
  %148 = vmatmul.mubr.f32.gmra.mrb[0].mxu0 %v34
  %v149 = vpop.f32.mrb[0].mxu0
  %v150 = vadd.f32 0.0, %v149
  %v151 = vpop.f32.mrb[0].mxu0
  %152 = vmatprep.mubr.f32.mxu0 0.0
  %153 = vmatmul.mubr.f32.gmra.mrb[0].mxu0 %v37
  %v154 = vpop.f32.mrb[0].mxu0
  %v155 = vadd.f32 0.0, %v154
  %v156 = vpop.f32.mrb[0].mxu0
  %157 = vmatprep.mubr.f32.mxu0 0.0
  %158 = vmatmul.mubr.f32.gmra.mrb[0].mxu0 %v40
  %v159 = vpop.f32.mrb[0].mxu0
  %v160 = vadd.f32 0.0, %v159
  %v161 = vpop.f32.mrb[0].mxu0
  %162 = vmatprep.mubr.f32.mxu0 0.0
  %163 = vmatmul.mubr.f32.gmra.mrb[0].mxu0 %v43
  %v164 = vpop.f32.mrb[0].mxu0
  %v165 = vadd.f32 0.0, %v164
  %v166 = vpop.f32.mrb[0].mxu0
  %167 = vmatprep.mubr.f32.mxu0 0.0
  %168 = vmatmul.mubr.f32.gmra.mrb[0].mxu0 %v46
  %v169 = vpop.f32.mrb[0].mxu0
  %v170 = vadd.f32 0.0, %v169
  %v171 = vpop.f32.mrb[0].mxu0
  %172 = vmatprep.mubr.f32.mxu0 0.0
  %173 = vmatmul.mubr.f32.gmra.mrb[0].mxu0 %v49
  %v174 = vpop.f32.mrb[0].mxu0
  %v175 = vadd.f32 0.0, %v174
  %v176 = vpop.f32.mrb[0].mxu0
  %177 = vmatprep.mubr.f32.mxu0 0.0
  %178 = vmatmul.mubr.f32.gmra.mrb[0].mxu0 %v52
  %v179 = vpop.f32.mrb[0].mxu0
  %v180 = vadd.f32 0.0, %v179
  %v181 = vpop.f32.mrb[0].mxu0
  %182 = vmatprep.mubr.f32.mxu0 0.0
  %183 = vmatmul.mubr.f32.gmra.mrb[0].mxu0 %v55
  %v184 = vpop.f32.mrb[0].mxu0
  %v185 = vadd.f32 0.0, %v184
  %v186 = vpop.f32.mrb[0].mxu0
  %187 = vmatprep.mubr.f32.mxu0 0.0
  %188 = vmatmul.mubr.f32.gmra.mrb[0].mxu0 %v58
  %v189 = vpop.f32.mrb[0].mxu0
  %v190 = vadd.f32 0.0, %v189
  %v191 = vpop.f32.mrb[0].mxu0
  %192 = vmatprep.mubr.f32.mxu0 0.0
  %193 = vmatmul.mubr.f32.gmra.mrb[0].mxu0 %v61
  %v194 = vpop.f32.mrb[0].mxu0
  %v195 = vadd.f32 0.0, %v194
  %v196 = vpop.f32.mrb[0].mxu0
  %197 = vmatprep.mubr.f32.mxu0 0.0
  %198 = vmatmul.mubr.f32.gmra.mrb[0].mxu0 %v64
  %v199 = vpop.f32.mrb[0].mxu0
  %v200 = vadd.f32 0.0, %v199
  %v201 = vpop.f32.mrb[0].mxu0
  %202 = vmatprep.mubr.f32.mxu0 0.0
  %203 = vmatmul.mubr.f32.gmra.mrb[0].mxu0 %v67
  %v204 = vpop.f32.mrb[0].mxu0
  %v205 = vadd.f32 0.0, %v204
  %v206 = vpop.f32.mrb[0].mxu0
  %207 = vmatprep.mubr.f32.mxu0 0.0
  %208 = vmatmul.mubr.f32.gmra.mrb[0].mxu0 %v70
  %v209 = vpop.f32.mrb[0].mxu0
  %v210 = vadd.f32 0.0, %v209
  %v211 = vpop.f32.mrb[0].mxu0
  %212 = vmatprep.mubr.f32.mxu0 0.0
  %213 = vmatmul.mubr.f32.gmra.mrb[0].mxu0 %v73
  %v214 = vpop.f32.mrb[0].mxu0
  %v215 = vadd.f32 0.0, %v214
  %v216 = vpop.f32.mrb[0].mxu0
  %217 = vmatprep.mubr.f32.mxu0 0.0
  %218 = vmatmul.mubr.f32.gmra.mrb[0].mxu0 %v76
  %v219 = vpop.f32.mrb[0].mxu0
  %v220 = vadd.f32 0.0, %v219
  %v221 = vpop.f32.mrb[0].mxu0
  %222 = vdwg.mxu0
  %v223 = vmul.f32 %v145, %v145
  %v224 = vmul.f32 %v150, %v150
  %v225 = vmul.f32 %v155, %v155
  %v226 = vmul.f32 %v160, %v160
  %v227 = vmul.f32 %v165, %v165
  %v228 = vmul.f32 %v170, %v170
  %v229 = vmul.f32 %v175, %v175
  %v230 = vmul.f32 %v180, %v180
  %v231 = vmul.f32 %v185, %v185
  %v232 = vmul.f32 %v190, %v190
  %v233 = vmul.f32 %v195, %v195
  %v234 = vmul.f32 %v200, %v200
  %v235 = vmul.f32 %v205, %v205
  %v236 = vmul.f32 %v210, %v210
  %v237 = vmul.f32 %v215, %v215
  %v238 = vmul.f32 %v220, %v220
  %vm239 = vcmask 261120
  %v240 = vsel %vm239, %v223, 0.0
  %241 = vadd.xlane.f32.xlu0 %v240
  %v242 = vpop.xlane.xlu0 %241
  %v243 = vsel %vm239, %v224, 0.0
  %244 = vadd.xlane.f32.xlu0 %v243
  %v245 = vpop.xlane.xlu0 %244
  %v246 = vsel %vm239, %v225, 0.0
  %247 = vadd.xlane.f32.xlu0 %v246
  %v248 = vpop.xlane.xlu0 %247
  %v249 = vsel %vm239, %v226, 0.0
  %250 = vadd.xlane.f32.xlu0 %v249
  %v251 = vpop.xlane.xlu0 %250
  %v252 = vsel %vm239, %v227, 0.0
  %253 = vadd.xlane.f32.xlu0 %v252
  %v254 = vpop.xlane.xlu0 %253
  %v255 = vsel %vm239, %v228, 0.0
  %256 = vadd.xlane.f32.xlu0 %v255
  %v257 = vpop.xlane.xlu0 %256
  %v258 = vsel %vm239, %v229, 0.0
  %259 = vadd.xlane.f32.xlu0 %v258
  %v260 = vpop.xlane.xlu0 %259
  %v261 = vsel %vm239, %v230, 0.0
  %262 = vadd.xlane.f32.xlu0 %v261
  %v263 = vpop.xlane.xlu0 %262
  %v264 = vsel %vm239, %v231, 0.0
  %265 = vadd.xlane.f32.xlu0 %v264
  %v266 = vpop.xlane.xlu0 %265
  %v267 = vsel %vm239, %v232, 0.0
  %268 = vadd.xlane.f32.xlu0 %v267
  %v269 = vpop.xlane.xlu0 %268
  %v270 = vsel %vm239, %v233, 0.0
  %271 = vadd.xlane.f32.xlu0 %v270
  %v272 = vpop.xlane.xlu0 %271
  %v273 = vsel %vm239, %v234, 0.0
  %274 = vadd.xlane.f32.xlu0 %v273
  %v275 = vpop.xlane.xlu0 %274
  %v276 = vsel %vm239, %v235, 0.0
  %277 = vadd.xlane.f32.xlu0 %v276
  %v278 = vpop.xlane.xlu0 %277
  %v279 = vsel %vm239, %v236, 0.0
  %280 = vadd.xlane.f32.xlu0 %v279
  %v281 = vpop.xlane.xlu0 %280
  %v282 = vsel %vm239, %v237, 0.0
  %283 = vadd.xlane.f32.xlu0 %v282
  %v284 = vpop.xlane.xlu0 %283
  %v285 = vsel %vm239, %v238, 0.0
  %286 = vadd.xlane.f32.xlu0 %v285
  %v287 = vpop.xlane.xlu0 %286
  %v288 = vsub.f32 %v242, %v223
  %v289 = vsub.f32 %v245, %v224
  %v290 = vsub.f32 %v248, %v225
  %v291 = vsub.f32 %v251, %v226
  %v292 = vsub.f32 %v254, %v227
  %v293 = vsub.f32 %v257, %v228
  %v294 = vsub.f32 %v260, %v229
  %v295 = vsub.f32 %v263, %v230
  %v296 = vsub.f32 %v266, %v231
  %v297 = vsub.f32 %v269, %v232
  %v298 = vsub.f32 %v272, %v233
  %v299 = vsub.f32 %v275, %v234
  %v300 = vsub.f32 %v278, %v235
  %v301 = vsub.f32 %v281, %v236
  %v302 = vsub.f32 %v284, %v237
  %v303 = vsub.f32 %v287, %v238
  %v304 = vmax.f32 %v288, 1e-08
  %v305 = vmax.f32 %v289, 1e-08
  %v306 = vmax.f32 %v290, 1e-08
  %v307 = vmax.f32 %v291, 1e-08
  %v308 = vmax.f32 %v292, 1e-08
  %v309 = vmax.f32 %v293, 1e-08
  %v310 = vmax.f32 %v294, 1e-08
  %v311 = vmax.f32 %v295, 1e-08
  %v312 = vmax.f32 %v296, 1e-08
  %v313 = vmax.f32 %v297, 1e-08
  %v314 = vmax.f32 %v298, 1e-08
  %v315 = vmax.f32 %v299, 1e-08
  %v316 = vmax.f32 %v300, 1e-08
  %v317 = vmax.f32 %v301, 1e-08
  %v318 = vmax.f32 %v302, 1e-08
  %v319 = vmax.f32 %v303, 1e-08
  %v320 = vxor.u32 %v145, 2147483648
  %v321 = vxor.u32 %v150, 2147483648
  %v322 = vxor.u32 %v155, 2147483648
  %v323 = vxor.u32 %v160, 2147483648
  %v324 = vxor.u32 %v165, 2147483648
  %v325 = vxor.u32 %v170, 2147483648
  %v326 = vxor.u32 %v175, 2147483648
  %v327 = vxor.u32 %v180, 2147483648
  %v328 = vxor.u32 %v185, 2147483648
  %v329 = vxor.u32 %v190, 2147483648
  %v330 = vxor.u32 %v195, 2147483648
  %v331 = vxor.u32 %v200, 2147483648
  %v332 = vxor.u32 %v205, 2147483648
  %v333 = vxor.u32 %v210, 2147483648
  %v334 = vxor.u32 %v215, 2147483648
  %v335 = vxor.u32 %v220, 2147483648
  %v336 = vmul.f32 %v320, 1.442695
  %v337 = vpow.pop %v336
  %v338 = vmul.f32 %v321, 1.442695
  %v339 = vpow.pop %v338
  %v340 = vmul.f32 %v322, 1.442695
  %v341 = vpow.pop %v340
  %v342 = vmul.f32 %v323, 1.442695
  %v343 = vpow.pop %v342
  %v344 = vmul.f32 %v324, 1.442695
  %v345 = vpow.pop %v344
  %v346 = vmul.f32 %v325, 1.442695
  %v347 = vpow.pop %v346
  %v348 = vmul.f32 %v326, 1.442695
  %v349 = vpow.pop %v348
  %v350 = vmul.f32 %v327, 1.442695
  %v351 = vpow.pop %v350
  %v352 = vmul.f32 %v328, 1.442695
  %v353 = vpow.pop %v352
  %v354 = vmul.f32 %v329, 1.442695
  %v355 = vpow.pop %v354
  %v356 = vmul.f32 %v330, 1.442695
  %v357 = vpow.pop %v356
  %v358 = vmul.f32 %v331, 1.442695
  %v359 = vpow.pop %v358
  %v360 = vmul.f32 %v332, 1.442695
  %v361 = vpow.pop %v360
  %v362 = vmul.f32 %v333, 1.442695
  %v363 = vpow.pop %v362
  %v364 = vmul.f32 %v334, 1.442695
  %v365 = vpow.pop %v364
  %v366 = vmul.f32 %v335, 1.442695
  %v367 = vpow.pop %v366
  %v368 = vadd.f32 %v337, 1.0
  %v369 = vadd.f32 %v339, 1.0
  %v370 = vadd.f32 %v341, 1.0
  %v371 = vadd.f32 %v343, 1.0
  %v372 = vadd.f32 %v345, 1.0
  %v373 = vadd.f32 %v347, 1.0
  %v374 = vadd.f32 %v349, 1.0
  %v375 = vadd.f32 %v351, 1.0
  %v376 = vadd.f32 %v353, 1.0
  %v377 = vadd.f32 %v355, 1.0
  %v378 = vadd.f32 %v357, 1.0
  %v379 = vadd.f32 %v359, 1.0
  %v380 = vadd.f32 %v361, 1.0
  %v381 = vadd.f32 %v363, 1.0
  %v382 = vadd.f32 %v365, 1.0
  %v383 = vadd.f32 %v367, 1.0
  %v384 = vrcp.pop %v368
  %v385 = vmul.f32 1.0, %v384
  %v386 = vrcp.pop %v369
  %v387 = vmul.f32 1.0, %v386
  %v388 = vrcp.pop %v370
  %v389 = vmul.f32 1.0, %v388
  %v390 = vrcp.pop %v371
  %v391 = vmul.f32 1.0, %v390
  %v392 = vrcp.pop %v372
  %v393 = vmul.f32 1.0, %v392
  %v394 = vrcp.pop %v373
  %v395 = vmul.f32 1.0, %v394
  %v396 = vrcp.pop %v374
  %v397 = vmul.f32 1.0, %v396
  %v398 = vrcp.pop %v375
  %v399 = vmul.f32 1.0, %v398
  %v400 = vrcp.pop %v376
  %v401 = vmul.f32 1.0, %v400
  %v402 = vrcp.pop %v377
  %v403 = vmul.f32 1.0, %v402
  %v404 = vrcp.pop %v378
  %v405 = vmul.f32 1.0, %v404
  %v406 = vrcp.pop %v379
  %v407 = vmul.f32 1.0, %v406
  %v408 = vrcp.pop %v380
  %v409 = vmul.f32 1.0, %v408
  %v410 = vrcp.pop %v381
  %v411 = vmul.f32 1.0, %v410
  %v412 = vrcp.pop %v382
  %v413 = vmul.f32 1.0, %v412
  %v414 = vrcp.pop %v383
  %v415 = vmul.f32 1.0, %v414
  %v416 = vmul.f32 %v385, 10.0
  %v417 = vmul.f32 %v387, 10.0
  %v418 = vmul.f32 %v389, 10.0
  %v419 = vmul.f32 %v391, 10.0
  %v420 = vmul.f32 %v393, 10.0
  %v421 = vmul.f32 %v395, 10.0
  %v422 = vmul.f32 %v397, 10.0
  %v423 = vmul.f32 %v399, 10.0
  %v424 = vmul.f32 %v401, 10.0
  %v425 = vmul.f32 %v403, 10.0
  %v426 = vmul.f32 %v405, 10.0
  %v427 = vmul.f32 %v407, 10.0
  %v428 = vmul.f32 %v409, 10.0
  %v429 = vmul.f32 %v411, 10.0
  %v430 = vmul.f32 %v413, 10.0
  %v431 = vmul.f32 %v415, 10.0
  %v432 = vadd.f32 %v416, 1.1
  %v433 = vadd.f32 %v417, 1.1
  %v434 = vadd.f32 %v418, 1.1
  %v435 = vadd.f32 %v419, 1.1
  %v436 = vadd.f32 %v420, 1.1
  %v437 = vadd.f32 %v421, 1.1
  %v438 = vadd.f32 %v422, 1.1
  %v439 = vadd.f32 %v423, 1.1
  %v440 = vadd.f32 %v424, 1.1
  %v441 = vadd.f32 %v425, 1.1
  %v442 = vadd.f32 %v426, 1.1
  %v443 = vadd.f32 %v427, 1.1
  %v444 = vadd.f32 %v428, 1.1
  %v445 = vadd.f32 %v429, 1.1
  %v446 = vadd.f32 %v430, 1.1
  %v447 = vadd.f32 %v431, 1.1
  %v448 = vmul.f32 %v432, %v432
  %v449 = vmul.f32 %v433, %v433
  %v450 = vmul.f32 %v434, %v434
  %v451 = vmul.f32 %v435, %v435
  %v452 = vmul.f32 %v436, %v436
  %v453 = vmul.f32 %v437, %v437
  %v454 = vmul.f32 %v438, %v438
  %v455 = vmul.f32 %v439, %v439
  %v456 = vmul.f32 %v440, %v440
  %v457 = vmul.f32 %v441, %v441
  %v458 = vmul.f32 %v442, %v442
  %v459 = vmul.f32 %v443, %v443
  %v460 = vmul.f32 %v444, %v444
  %v461 = vmul.f32 %v445, %v445
  %v462 = vmul.f32 %v446, %v446
  %v463 = vmul.f32 %v447, %v447
  %v464 = vsub.f32 %v448, 1.0
  %v465 = vsub.f32 %v449, 1.0
  %v466 = vsub.f32 %v450, 1.0
  %v467 = vsub.f32 %v451, 1.0
  %v468 = vsub.f32 %v452, 1.0
  %v469 = vsub.f32 %v453, 1.0
  %v470 = vsub.f32 %v454, 1.0
  %v471 = vsub.f32 %v455, 1.0
  %v472 = vsub.f32 %v456, 1.0
  %v473 = vsub.f32 %v457, 1.0
  %v474 = vsub.f32 %v458, 1.0
  %v475 = vsub.f32 %v459, 1.0
  %v476 = vsub.f32 %v460, 1.0
  %v477 = vsub.f32 %v461, 1.0
  %v478 = vsub.f32 %v462, 1.0
  %v479 = vsub.f32 %v463, 1.0
  %v480 = vrcp.pop %v304
  %v481 = vrcp.pop %v305
  %v482 = vrcp.pop %v306
  %v483 = vrcp.pop %v307
  %v484 = vrcp.pop %v308
  %v485 = vrcp.pop %v309
  %v486 = vrcp.pop %v310
  %v487 = vrcp.pop %v311
  %v488 = vrcp.pop %v312
  %v489 = vrcp.pop %v313
  %v490 = vrcp.pop %v314
  %v491 = vrcp.pop %v315
  %v492 = vrcp.pop %v316
  %v493 = vrcp.pop %v317
  %v494 = vrcp.pop %v318
  %v495 = vrcp.pop %v319
  %v496 = vmul.f32 %v464, %v480
  %v497 = vmul.f32 %v465, %v481
  %v498 = vmul.f32 %v466, %v482
  %v499 = vmul.f32 %v467, %v483
  %v500 = vmul.f32 %v468, %v484
  %v501 = vmul.f32 %v469, %v485
  %v502 = vmul.f32 %v470, %v486
  %v503 = vmul.f32 %v471, %v487
  %v504 = vmul.f32 %v472, %v488
  %v505 = vmul.f32 %v473, %v489
  %v506 = vmul.f32 %v474, %v490
  %v507 = vmul.f32 %v475, %v491
  %v508 = vmul.f32 %v476, %v492
  %v509 = vmul.f32 %v477, %v493
  %v510 = vmul.f32 %v478, %v494
  %v511 = vmul.f32 %v479, %v495
  %v512 = vrsqrt.pop %v496
  %v513 = vmul.f32 %v496, %v512
  %vm514 = vcmp.eq.f32.partialorder %v496, inf
  %v515 = vsel %vm514, %v496, %v513
  %vm516 = vcmp.eq.f32.partialorder %v496, 0.0
  %v517 = vand.u32 %v496, 2147483648
  %v518 = vsel %vm516, %v517, %v515
  %v519 = vrsqrt.pop %v497
  %v520 = vmul.f32 %v497, %v519
  %vm521 = vcmp.eq.f32.partialorder %v497, inf
  %v522 = vsel %vm521, %v497, %v520
  %vm523 = vcmp.eq.f32.partialorder %v497, 0.0
  %v524 = vand.u32 %v497, 2147483648
  %v525 = vsel %vm523, %v524, %v522
  %v526 = vrsqrt.pop %v498
  %v527 = vmul.f32 %v498, %v526
  %vm528 = vcmp.eq.f32.partialorder %v498, inf
  %v529 = vsel %vm528, %v498, %v527
  %vm530 = vcmp.eq.f32.partialorder %v498, 0.0
  %v531 = vand.u32 %v498, 2147483648
  %v532 = vsel %vm530, %v531, %v529
  %v533 = vrsqrt.pop %v499
  %v534 = vmul.f32 %v499, %v533
  %vm535 = vcmp.eq.f32.partialorder %v499, inf
  %v536 = vsel %vm535, %v499, %v534
  %vm537 = vcmp.eq.f32.partialorder %v499, 0.0
  %v538 = vand.u32 %v499, 2147483648
  %v539 = vsel %vm537, %v538, %v536
  %v540 = vrsqrt.pop %v500
  %v541 = vmul.f32 %v500, %v540
  %vm542 = vcmp.eq.f32.partialorder %v500, inf
  %v543 = vsel %vm542, %v500, %v541
  %vm544 = vcmp.eq.f32.partialorder %v500, 0.0
  %v545 = vand.u32 %v500, 2147483648
  %v546 = vsel %vm544, %v545, %v543
  %v547 = vrsqrt.pop %v501
  %v548 = vmul.f32 %v501, %v547
  %vm549 = vcmp.eq.f32.partialorder %v501, inf
  %v550 = vsel %vm549, %v501, %v548
  %vm551 = vcmp.eq.f32.partialorder %v501, 0.0
  %v552 = vand.u32 %v501, 2147483648
  %v553 = vsel %vm551, %v552, %v550
  %v554 = vrsqrt.pop %v502
  %v555 = vmul.f32 %v502, %v554
  %vm556 = vcmp.eq.f32.partialorder %v502, inf
  %v557 = vsel %vm556, %v502, %v555
  %vm558 = vcmp.eq.f32.partialorder %v502, 0.0
  %v559 = vand.u32 %v502, 2147483648
  %v560 = vsel %vm558, %v559, %v557
  %v561 = vrsqrt.pop %v503
  %v562 = vmul.f32 %v503, %v561
  %vm563 = vcmp.eq.f32.partialorder %v503, inf
  %v564 = vsel %vm563, %v503, %v562
  %vm565 = vcmp.eq.f32.partialorder %v503, 0.0
  %v566 = vand.u32 %v503, 2147483648
  %v567 = vsel %vm565, %v566, %v564
  %v568 = vrsqrt.pop %v504
  %v569 = vmul.f32 %v504, %v568
  %vm570 = vcmp.eq.f32.partialorder %v504, inf
  %v571 = vsel %vm570, %v504, %v569
  %vm572 = vcmp.eq.f32.partialorder %v504, 0.0
  %v573 = vand.u32 %v504, 2147483648
  %v574 = vsel %vm572, %v573, %v571
  %v575 = vrsqrt.pop %v505
  %v576 = vmul.f32 %v505, %v575
  %vm577 = vcmp.eq.f32.partialorder %v505, inf
  %v578 = vsel %vm577, %v505, %v576
  %vm579 = vcmp.eq.f32.partialorder %v505, 0.0
  %v580 = vand.u32 %v505, 2147483648
  %v581 = vsel %vm579, %v580, %v578
  %v582 = vrsqrt.pop %v506
  %v583 = vmul.f32 %v506, %v582
  %vm584 = vcmp.eq.f32.partialorder %v506, inf
  %v585 = vsel %vm584, %v506, %v583
  %vm586 = vcmp.eq.f32.partialorder %v506, 0.0
  %v587 = vand.u32 %v506, 2147483648
  %v588 = vsel %vm586, %v587, %v585
  %v589 = vrsqrt.pop %v507
  %v590 = vmul.f32 %v507, %v589
  %vm591 = vcmp.eq.f32.partialorder %v507, inf
  %v592 = vsel %vm591, %v507, %v590
  %vm593 = vcmp.eq.f32.partialorder %v507, 0.0
  %v594 = vand.u32 %v507, 2147483648
  %v595 = vsel %vm593, %v594, %v592
  %v596 = vrsqrt.pop %v508
  %v597 = vmul.f32 %v508, %v596
  %vm598 = vcmp.eq.f32.partialorder %v508, inf
  %v599 = vsel %vm598, %v508, %v597
  %vm600 = vcmp.eq.f32.partialorder %v508, 0.0
  %v601 = vand.u32 %v508, 2147483648
  %v602 = vsel %vm600, %v601, %v599
  %v603 = vrsqrt.pop %v509
  %v604 = vmul.f32 %v509, %v603
  %vm605 = vcmp.eq.f32.partialorder %v509, inf
  %v606 = vsel %vm605, %v509, %v604
  %vm607 = vcmp.eq.f32.partialorder %v509, 0.0
  %v608 = vand.u32 %v509, 2147483648
  %v609 = vsel %vm607, %v608, %v606
  %v610 = vrsqrt.pop %v510
  %v611 = vmul.f32 %v510, %v610
  %vm612 = vcmp.eq.f32.partialorder %v510, inf
  %v613 = vsel %vm612, %v510, %v611
  %vm614 = vcmp.eq.f32.partialorder %v510, 0.0
  %v615 = vand.u32 %v510, 2147483648
  %v616 = vsel %vm614, %v615, %v613
  %v617 = vrsqrt.pop %v511
  %v618 = vmul.f32 %v511, %v617
  %vm619 = vcmp.eq.f32.partialorder %v511, inf
  %v620 = vsel %vm619, %v511, %v618
  %vm621 = vcmp.eq.f32.partialorder %v511, 0.0
  %v622 = vand.u32 %v511, 2147483648
  %v623 = vsel %vm621, %v622, %v620
  %625 = vset.pattern.permute.xlu0 0
  %626 = vperm.xlu0 %625, %v518
  %v627 = vpop.permute.xlu0 %626
  %630 = vset.pattern.permute.xlu0 0
  %631 = vperm.xlu0 %630, %v525
  %v632 = vpop.permute.xlu0 %631
  %635 = vset.pattern.permute.xlu0 0
  %636 = vperm.xlu0 %635, %v532
  %v637 = vpop.permute.xlu0 %636
  %640 = vset.pattern.permute.xlu0 0
  %641 = vperm.xlu0 %640, %v539
  %v642 = vpop.permute.xlu0 %641
  %645 = vset.pattern.permute.xlu0 0
  %646 = vperm.xlu0 %645, %v546
  %v647 = vpop.permute.xlu0 %646
  %650 = vset.pattern.permute.xlu0 0
  %651 = vperm.xlu0 %650, %v553
  %v652 = vpop.permute.xlu0 %651
  %655 = vset.pattern.permute.xlu0 0
  %656 = vperm.xlu0 %655, %v560
  %v657 = vpop.permute.xlu0 %656
  %660 = vset.pattern.permute.xlu0 0
  %661 = vperm.xlu0 %660, %v567
  %v662 = vpop.permute.xlu0 %661
  %665 = vset.pattern.permute.xlu0 0
  %666 = vperm.xlu0 %665, %v574
  %v667 = vpop.permute.xlu0 %666
  %670 = vset.pattern.permute.xlu0 0
  %671 = vperm.xlu0 %670, %v581
  %v672 = vpop.permute.xlu0 %671
  %675 = vset.pattern.permute.xlu0 0
  %676 = vperm.xlu0 %675, %v588
  %v677 = vpop.permute.xlu0 %676
  %680 = vset.pattern.permute.xlu0 0
  %681 = vperm.xlu0 %680, %v595
  %v682 = vpop.permute.xlu0 %681
  %685 = vset.pattern.permute.xlu0 0
  %686 = vperm.xlu0 %685, %v602
  %v687 = vpop.permute.xlu0 %686
  %690 = vset.pattern.permute.xlu0 0
  %691 = vperm.xlu0 %690, %v609
  %v692 = vpop.permute.xlu0 %691
  %695 = vset.pattern.permute.xlu0 0
  %696 = vperm.xlu0 %695, %v616
  %v697 = vpop.permute.xlu0 %696
  %700 = vset.pattern.permute.xlu0 0
  %701 = vperm.xlu0 %700, %v623
  %v702 = vpop.permute.xlu0 %701
  %v704 = vmul.f32 %v145, %v627
  %v705 = vmul.f32 %v150, %v632
  %v706 = vmul.f32 %v155, %v637
  %v707 = vmul.f32 %v160, %v642
  %v708 = vmul.f32 %v165, %v647
  %v709 = vmul.f32 %v170, %v652
  %v710 = vmul.f32 %v175, %v657
  %v711 = vmul.f32 %v180, %v662
  %v712 = vmul.f32 %v185, %v667
  %v713 = vmul.f32 %v190, %v672
  %v714 = vmul.f32 %v195, %v677
  %v715 = vmul.f32 %v200, %v682
  %v716 = vmul.f32 %v205, %v687
  %v717 = vmul.f32 %v210, %v692
  %v718 = vmul.f32 %v215, %v697
  %v719 = vmul.f32 %v220, %v702
  %v720 = vlaneseq
  %v721 = vand.u32 %v720, 127
  %vm722 = vcmp.eq.s32.totalorder %v721, 0
  %724 = vset.pattern.permute.xlu0 0
  %725 = vperm.xlu0 %724, %v432
  %v726 = vpop.permute.xlu0 %725
  %729 = vset.pattern.permute.xlu0 0
  %730 = vperm.xlu0 %729, %v433
  %v731 = vpop.permute.xlu0 %730
  %734 = vset.pattern.permute.xlu0 0
  %735 = vperm.xlu0 %734, %v434
  %v736 = vpop.permute.xlu0 %735
  %739 = vset.pattern.permute.xlu0 0
  %740 = vperm.xlu0 %739, %v435
  %v741 = vpop.permute.xlu0 %740
  %744 = vset.pattern.permute.xlu0 0
  %745 = vperm.xlu0 %744, %v436
  %v746 = vpop.permute.xlu0 %745
  %749 = vset.pattern.permute.xlu0 0
  %750 = vperm.xlu0 %749, %v437
  %v751 = vpop.permute.xlu0 %750
  %754 = vset.pattern.permute.xlu0 0
  %755 = vperm.xlu0 %754, %v438
  %v756 = vpop.permute.xlu0 %755
  %759 = vset.pattern.permute.xlu0 0
  %760 = vperm.xlu0 %759, %v439
  %v761 = vpop.permute.xlu0 %760
  %764 = vset.pattern.permute.xlu0 0
  %765 = vperm.xlu0 %764, %v440
  %v766 = vpop.permute.xlu0 %765
  %769 = vset.pattern.permute.xlu0 0
  %770 = vperm.xlu0 %769, %v441
  %v771 = vpop.permute.xlu0 %770
  %774 = vset.pattern.permute.xlu0 0
  %775 = vperm.xlu0 %774, %v442
  %v776 = vpop.permute.xlu0 %775
  %779 = vset.pattern.permute.xlu0 0
  %780 = vperm.xlu0 %779, %v443
  %v781 = vpop.permute.xlu0 %780
  %784 = vset.pattern.permute.xlu0 0
  %785 = vperm.xlu0 %784, %v444
  %v786 = vpop.permute.xlu0 %785
  %789 = vset.pattern.permute.xlu0 0
  %790 = vperm.xlu0 %789, %v445
  %v791 = vpop.permute.xlu0 %790
  %794 = vset.pattern.permute.xlu0 0
  %795 = vperm.xlu0 %794, %v446
  %v796 = vpop.permute.xlu0 %795
  %799 = vset.pattern.permute.xlu0 0
  %800 = vperm.xlu0 %799, %v447
  %v801 = vpop.permute.xlu0 %800
  %v803 = vsel %vm722, %v726, %v704
  %v804 = vsel %vm722, %v731, %v705
  %v805 = vsel %vm722, %v736, %v706
  %v806 = vsel %vm722, %v741, %v707
  %v807 = vsel %vm722, %v746, %v708
  %v808 = vsel %vm722, %v751, %v709
  %v809 = vsel %vm722, %v756, %v710
  %v810 = vsel %vm722, %v761, %v711
  %v811 = vsel %vm722, %v766, %v712
  %v812 = vsel %vm722, %v771, %v713
  %v813 = vsel %vm722, %v776, %v714
  %v814 = vsel %vm722, %v781, %v715
  %v815 = vsel %vm722, %v786, %v716
  %v816 = vsel %vm722, %v791, %v717
  %v817 = vsel %vm722, %v796, %v718
  %v818 = vsel %vm722, %v801, %v719
  %819 = vst.msk [vmem:[%s2] sm:$0xff] %vm239, %v803
  %820 = vst.msk [vmem:[%s2 + $0x8] sm:$0xff] %vm239, %v804
  %821 = vst.msk [vmem:[%s2 + $0x10] sm:$0xff] %vm239, %v805
  %822 = vst.msk [vmem:[%s2 + $0x18] sm:$0xff] %vm239, %v806
  %823 = vst.msk [vmem:[%s2 + $0x20] sm:$0xff] %vm239, %v807
  %824 = vst.msk [vmem:[%s2 + $0x28] sm:$0xff] %vm239, %v808
  %825 = vst.msk [vmem:[%s2 + $0x30] sm:$0xff] %vm239, %v809
  %826 = vst.msk [vmem:[%s2 + $0x38] sm:$0xff] %vm239, %v810
  %827 = vst.msk [vmem:[%s2 + $0x40] sm:$0xff] %vm239, %v811
  %828 = vst.msk [vmem:[%s2 + $0x48] sm:$0xff] %vm239, %v812
  %829 = vst.msk [vmem:[%s2 + $0x50] sm:$0xff] %vm239, %v813
  %830 = vst.msk [vmem:[%s2 + $0x58] sm:$0xff] %vm239, %v814
  %831 = vst.msk [vmem:[%s2 + $0x60] sm:$0xff] %vm239, %v815
  %832 = vst.msk [vmem:[%s2 + $0x68] sm:$0xff] %vm239, %v816
  %833 = vst.msk [vmem:[%s2 + $0x70] sm:$0xff] %vm239, %v817
  %834 = vst.msk [vmem:[%s2 + $0x78] sm:$0xff] %vm239, %v818
  // Predicated region
  $region10: #{tpu_custom_call.1} parent=0 // pred_check
    _
  $region11: #{tpu_custom_call.1} parent=0 // pred_check_branch
    %836 = sbr.rel (0) target = $region13
  $region12: #{tpu_custom_call.1} parent=0 // pred_region
    _
  $region13: #{tpu_custom_call.1} parent=0 // pred_fallthru
    _
  // Predicated region
  $region14: #{tpu_custom_call.1} parent=0 // pred_check
    _
  $region15: #{tpu_custom_call.1} parent=0 // pred_check_branch
    %838 = sbr.rel (0) target = $region17
  $region16: #{tpu_custom_call.1} parent=0 // pred_region
    _
  $region17: #{tpu_custom_call.1} parent=0 // pred_fallthru
    _

</llo_original>
